<compile_context>
chip_gen: v7x
topology: tpu7x:2x2x1
jax: 0.10.0
libtpu: 0.0.40
codegen_flags: <defaults>
</compile_context>

<pallas_src>
import jax
import jax.numpy as jnp
from jax.experimental import pallas as pl
from jax.experimental.pallas import tpu as pltpu


def _round_up(n, m):
    return ((n + m - 1) // m) * m


# ----------------------------------------------------------------------------
# Generation-aware configuration.
# ----------------------------------------------------------------------------
def _select_config():
    kind = ""
    try:
        kind = jax.devices()[0].device_kind.lower()
    except Exception:
        pass
    if "v7" in kind:
        # v7x: 64 MiB VMEM per TensorCore, 2 TCs/chip -> moderate tiles,
        # headroom for the materialized (tm, tf) hidden intermediate.
        return {"tm": 512, "tf": 512, "vmem_limit": 52 * 1024 * 1024, "two_tc": True}
    if "v5e" in kind or "v5 lite" in kind or "v5lite" in kind:
        # v5e: ~240 flops/byte break-even; keep tm moderate, 128 MiB VMEM.
        return {"tm": 384, "tf": 512, "vmem_limit": 100 * 1024 * 1024, "two_tc": False}
    # v6e (and default): 128 MiB VMEM, ~680 flops/byte break-even -> big tiles.
    return {"tm": 512, "tf": 1024, "vmem_limit": 100 * 1024 * 1024, "two_tc": False}


def _vmem_bytes(tm, tf, e_pad, x_itemsize):
    """Rough VMEM footprint estimate for one grid step (double-buffered specs)."""
    return (
        2 * tm * e_pad * x_itemsize      # x row tile (double-buffered)
        + 2 * tm * e_pad * x_itemsize    # out row tile (double-buffered)
        + 2 * e_pad * tf * 2             # W1 slab, bf16 (double-buffered)
        + 2 * tf * e_pad * 2             # W2 slab, bf16 (double-buffered)
        + tm * e_pad * 4                 # f32 accumulator scratch
        + tm * e_pad * 2                 # bf16 activation scratch
        + tm * tf * 6                    # materialized hidden (f32 + bf16 cast)
        + 4 * (tf + e_pad) * 4           # bias slabs
    )


# ----------------------------------------------------------------------------
# Kernel.
# ----------------------------------------------------------------------------
def _ffn_kernel(alpha_ref, x_ref, w1_ref, b1_ref, w2_ref, b2_ref, o_ref,
                acc_ref, xbf_ref):
    """One (row-tile i, F-tile j) step.

    alpha_ref : SMEM (1, 1)         f32 learned gate
    x_ref     : VMEM (tm, E_pad)    input row tile (original dtype), resident over j
    w1_ref    : VMEM (E_pad, tf)    W1^T slab (K-major), bf16
    b1_ref    : VMEM (1, tf)        bias-1 slab, f32
    w2_ref    : VMEM (tf, E_pad)    W2^T slab (K-major), bf16
    b2_ref    : VMEM (1, E_pad)     bias-2, f32
    o_ref     : VMEM (tm, E_pad)    output row tile (written on last j only)
    acc_ref   : VMEM (tm, E_pad)    f32 partial-projection accumulator (scratch)
    xbf_ref   : VMEM (tm, E_pad)    bf16 activation scratch (cast once per row tile)
    """
    j = pl.program_id(1)
    nj = pl.num_programs(1)

    @pl.when(j == 0)
    def _():
        acc_ref[...] = jnp.zeros_like(acc_ref)
        # Hoisted cast: one bf16 copy per row tile, reused across all F-tiles.
        xbf_ref[...] = x_ref[...].astype(jnp.bfloat16)

    # hidden tile: relu(x @ W1^T[:, jf] + b1[jf])  -> (tm, tf), f32 accumulation.
    h = jnp.dot(xbf_ref[...], w1_ref[...], preferred_element_type=jnp.float32)
    h = jnp.maximum(h + b1_ref[...], 0.0)

    # partial projection: h @ W2^T[jf, :]  -> (tm, E_pad), f32.
    partial = jnp.dot(h.astype(jnp.bfloat16), w2_ref[...],
                      preferred_element_type=jnp.float32)

    @pl.when(j < nj - 1)
    def _():
        acc_ref[...] += partial

    @pl.when(j == nj - 1)
    def _():
        # Epilogue fusion: fold the last partial directly into the output write
        # (no extra full-tile acc store + reload).
        alpha = alpha_ref[0, 0]
        y = acc_ref[...] + partial + b2_ref[...]
        o_ref[...] = (x_ref[...].astype(jnp.float32) + y * alpha).astype(o_ref.dtype)


# ----------------------------------------------------------------------------
# One-time parameter preparation (hoist padding / transpose / bf16 cast).
# ----------------------------------------------------------------------------
def prepare_ffn_params(w1, b1, w2, b2, alpha, *, config=None):
    """w1: (F, E), b1: (F,), w2: (E, F), b2: (E,), alpha: scalar.
    Returns padded, K-major, bf16 weights + metadata. Call once, reuse per step."""
    if config is None:
        config = _select_config()
    F_dim, E = w1.shape

    E_pad = _round_up(E, 128)
    tf_eff = min(config["tf"], _round_up(F_dim, 128))
    F_pad = _round_up(F_dim, tf_eff)

    # K-major (canonical MXU) layouts: contract on the LHS minor / RHS major dim.
    w1_t = jnp.transpose(w1).astype(jnp.bfloat16)   # (E, F)
    w2_t = jnp.transpose(w2).astype(jnp.bfloat16)   # (F, E)
    if w1_t.shape != (E_pad, F_pad):
        w1_t = jnp.zeros((E_pad, F_pad), jnp.bfloat16).at[:E, :F_dim].set(w1_t)
    if w2_t.shape != (F_pad, E_pad):
        w2_t = jnp.zeros((F_pad, E_pad), jnp.bfloat16).at[:F_dim, :E].set(w2_t)

    b1_p = b1.astype(jnp.float32).reshape(1, F_dim)
    if F_pad != F_dim:
        b1_p = jnp.zeros((1, F_pad), jnp.float32).at[:, :F_dim].set(b1_p)
    b2_p = b2.astype(jnp.float32).reshape(1, E)
    if E_pad != E:
        b2_p = jnp.zeros((1, E_pad), jnp.float32).at[:, :E].set(b2_p)

    alpha_2d = jnp.asarray(alpha, jnp.float32).reshape(1, 1)

    return dict(w1=w1_t, b1=b1_p, w2=w2_t, b2=b2_p, alpha=alpha_2d,
                E=E, F=F_dim, E_pad=E_pad, F_pad=F_pad, tf=tf_eff, config=config)


# ----------------------------------------------------------------------------
# Apply (per-step path; no weight copies here).
# ----------------------------------------------------------------------------
def feed_forward_apply(x, params):
    """out = x + (relu(x @ W1^T + b1) @ W2^T + b2) * alpha, x: (B, S, E)."""
    cfg = params["config"]
    E, E_pad = params["E"], params["E_pad"]
    F_pad, tf_eff = params["F_pad"], params["tf"]

    B, S, _ = x.shape
    N = B * S

    itemsize = jnp.dtype(x.dtype).itemsize
    # Sublane packing: 8 rows for 32-bit, 16 for 16-bit, 32 for 8-bit activations.
    row_align = {4: 8, 2: 16, 1: 32}.get(itemsize, 8)
    N_ceil = max(_round_up(N, row_align), row_align)

    tm_eff = _round_up(min(cfg["tm"], N_ceil), row_align)
    # v7x: give both TensorCores at least one "parallel" row tile.
    if cfg.get("two_tc") and N_ceil // tm_eff < 2 and N_ceil >= 2 * row_align:
        tm_eff = _round_up((N_ceil + 1) // 2, row_align)
    # Shrink the row tile until the footprint fits the per-generation VMEM budget.
    while tm_eff > row_align and _vmem_bytes(tm_eff, tf_eff, E_pad, itemsize) > int(
            cfg["vmem_limit"] * 0.85):
        tm_eff = max(row_align, _round_up(tm_eff // 2, row_align))

    N_pad = _round_up(N, tm_eff)

    x2d = x.reshape(N, E)
    if (N_pad, E_pad) != (N, E):
        x2d = jnp.zeros((N_pad, E_pad), x.dtype).at[:N, :E].set(x2d)

    grid = (N_pad // tm_eff, F_pad // tf_eff)

    out2d = pl.pallas_call(
        _ffn_kernel,
        out_shape=jax.ShapeDtypeStruct((N_pad, E_pad), x.dtype),
        grid_spec=pltpu.PrefetchScalarGridSpec(
            num_scalar_prefetch=0,
            grid=grid,
            in_specs=[
                # alpha scalar in SMEM
                pl.BlockSpec((1, 1), lambda i, j: (0, 0), memory_space=pltpu.SMEM),
                # activations: one row tile per i, resident across j
                pl.BlockSpec((tm_eff, E_pad), lambda i, j: (i, 0)),
                # W1^T slab: columns jf of (E_pad, F_pad)
                pl.BlockSpec((E_pad, tf_eff), lambda i, j: (0, j)),
                # b1 slab
                pl.BlockSpec((1, tf_eff), lambda i, j: (0, j)),
                # W2^T slab: rows jf of (F_pad, E_pad)
                pl.BlockSpec((tf_eff, E_pad), lambda i, j: (j, 0)),
                # b2 (grid-invariant, tiny)
                pl.BlockSpec((1, E_pad), lambda i, j: (0, 0)),
            ],
            out_specs=pl.BlockSpec((tm_eff, E_pad), lambda i, j: (i, 0)),
            scratch_shapes=[
                pltpu.VMEM((tm_eff, E_pad), jnp.float32),    # acc
                pltpu.VMEM((tm_eff, E_pad), jnp.bfloat16),   # hoisted bf16 x
            ],
        ),
        compiler_params=pltpu.CompilerParams(
            # row axis parallel (v7x 2-TC sharding); F/reduction axis last, arbitrary
            dimension_semantics=("parallel", "arbitrary"),
            vmem_limit_bytes=cfg["vmem_limit"],
        ),
    )(params["alpha"], x2d, params["w1"], params["b1"], params["w2"], params["b2"])

    return out2d[:N, :E].reshape(B, S, E)


def feed_forward_module(x, w1, b1, w2, b2, alpha):
    """Convenience wrapper (prepare + apply). For repeated calls with the same
    weights, call prepare_ffn_params once and feed_forward_apply per step."""
    params = prepare_ffn_params(w1, b1, w2, b2, alpha)
    return feed_forward_apply(x, params)


def _reference(x, w1, b1, w2, b2, alpha):
    h = jnp.maximum(jnp.einsum("bse,fe->bsf", x, w1) + b1, 0.0)
    y = jnp.einsum("bsf,ef->bse", h, w2) + b2
    return x + y * alpha


if __name__ == "__main__":
    # Small shapes consistent with the module: batch=2, seq=8, emb_dim=32, ff_dim=64
    B, S, E, FF = 2, 8, 32, 64

    key = jax.random.PRNGKey(0)
    kx, kw1, kb1, kw2, kb2 = jax.random.split(key, 5)

    x = jax.random.normal(kx, (B, S, E), dtype=jnp.float32)
    # PyTorch nn.Linear stores weight as (out_features, in_features).
    w1 = jax.random.normal(kw1, (FF, E), dtype=jnp.float32) * (1.0 / jnp.sqrt(E))
    b1 = jax.random.normal(kb1, (FF,), dtype=jnp.float32) * 0.01
    w2 = jax.random.normal(kw2, (E, FF), dtype=jnp.float32) * (1.0 / jnp.sqrt(FF))
    b2 = jax.random.normal(kb2, (E,), dtype=jnp.float32) * 0.01
    # nn.Parameter(torch.Tensor([0])) initializes alpha to 0; use a nonzero
    # value so the MLP branch is actually exercised numerically.
    alpha = jnp.float32(0.5)

    params = prepare_ffn_params(w1, b1, w2, b2, alpha)
    out = feed_forward_apply(x, params)
    out = jax.block_until_ready(out)

    ref = _reference(x, w1, b1, w2, b2, alpha)
    assert out.shape == (B, S, E)
    # bf16 matmul operands (f32 accumulation) -> loosened tolerance vs f32 ref.
    assert jnp.allclose(out, ref, atol=3e-2, rtol=3e-2), "mismatch vs reference"

    print("KERNEL_OK")
</pallas_src>

<mosaic_0001>
module attributes {stable_mosaic.version = 11 : i64} {
  func.func @_ffn_kernel(%arg0: i32, %arg1: i32, %arg2: memref<1x1xf32, #tpu.memory_space<smem>>, %arg3: memref<16x128xf32, #tpu.memory_space<vmem>>, %arg4: memref<128x128xbf16, #tpu.memory_space<vmem>>, %arg5: memref<1x128xf32, #tpu.memory_space<vmem>>, %arg6: memref<128x128xbf16, #tpu.memory_space<vmem>>, %arg7: memref<1x128xf32, #tpu.memory_space<vmem>>, %arg8: memref<16x128xf32, #tpu.memory_space<vmem>>, %arg9: memref<16x128xf32, #tpu.memory_space<vmem>>, %arg10: memref<16x128xbf16, #tpu.memory_space<vmem>>) attributes {dimension_semantics = [#tpu.dimension_semantics<parallel>, #tpu.dimension_semantics<arbitrary>], iteration_bounds = array<i64: 1, 1>, scalar_prefetch = 0 : i64, scratch_operands = 2 : i64, tpu.core_type = #tpu.core_type<tc>, window_params = [{transform_indices = @transform_0, window_bounds = array<i64: 1, 1>}, {transform_indices = @transform_1, window_bounds = array<i64: 16, 128>}, {transform_indices = @transform_2, window_bounds = array<i64: 128, 128>}, {transform_indices = @transform_3, window_bounds = array<i64: 1, 128>}, {transform_indices = @transform_4, window_bounds = array<i64: 128, 128>}, {pipeline_mode = #tpu.pipeline_mode<synchronous>, transform_indices = @transform_5, window_bounds = array<i64: 1, 128>}, {transform_indices = @transform_6, window_bounds = array<i64: 16, 128>}]} {
    %c0_i32 = arith.constant 0 : i32
    %0 = arith.cmpi eq, %arg1, %c0_i32 : i32
    %1 = arith.extui %0 : i1 to i32
    %c0_i32_0 = arith.constant 0 : i32
    %2 = arith.cmpi ne, %1, %c0_i32_0 : i32
    scf.if %2 {
      %cst_14 = arith.constant 0.000000e+00 : f32
      %20 = vector.broadcast %cst_14 : f32 to vector<16x128xf32>
      %c0_15 = arith.constant 0 : index
      %c0_16 = arith.constant 0 : index
      %21 = vector.load %arg9[%c0_15, %c0_16] : memref<16x128xf32, #tpu.memory_space<vmem>>, vector<16x128xf32>
      tpu.vector_store %arg9[%c0_15, %c0_16], %20 {strides = array<i32>} : memref<16x128xf32, #tpu.memory_space<vmem>>, vector<16x128xf32>,
      %c0_17 = arith.constant 0 : index
      %c0_18 = arith.constant 0 : index
      %22 = vector.load %arg3[%c0_17, %c0_18] : memref<16x128xf32, #tpu.memory_space<vmem>>, vector<16x128xf32>
      %23 = arith.truncf %22 : vector<16x128xf32> to vector<16x128xbf16>
      %c0_19 = arith.constant 0 : index
      %c0_20 = arith.constant 0 : index
      %24 = vector.load %arg10[%c0_19, %c0_20] : memref<16x128xbf16, #tpu.memory_space<vmem>>, vector<16x128xbf16>
      tpu.vector_store %arg10[%c0_19, %c0_20], %23 {strides = array<i32>} : memref<16x128xbf16, #tpu.memory_space<vmem>>, vector<16x128xbf16>,
    } else {
    }
    %c0 = arith.constant 0 : index
    %c0_1 = arith.constant 0 : index
    %3 = vector.load %arg10[%c0, %c0_1] : memref<16x128xbf16, #tpu.memory_space<vmem>>, vector<16x128xbf16>
    %c0_2 = arith.constant 0 : index
    %c0_3 = arith.constant 0 : index
    %4 = vector.load %arg4[%c0_2, %c0_3] : memref<128x128xbf16, #tpu.memory_space<vmem>>, vector<128x128xbf16>
    %cst = arith.constant dense<0.000000e+00> : vector<16x128xf32>
    %5 = tpu.matmul %3, %4, %cst {dimension_numbers = #tpu.dot_dimension_numbers<[1], [0], [0], [1], [0, 0, 1, 1], [], []>} : vector<16x128xbf16>, vector<128x128xbf16>, vector<16x128xf32> -> vector<16x128xf32>
    %c0_4 = arith.constant 0 : index
    %c0_5 = arith.constant 0 : index
    %6 = vector.load %arg5[%c0_4, %c0_5] : memref<1x128xf32, #tpu.memory_space<vmem>>, vector<1x128xf32>
    %7 = vector.broadcast %6 : vector<1x128xf32> to vector<16x128xf32>
    %8 = arith.addf %5, %7 : vector<16x128xf32>
    %cst_6 = arith.constant 0.000000e+00 : f32
    %9 = vector.broadcast %cst_6 : f32 to vector<16x128xf32>
    %10 = arith.maximumf %8, %9 : vector<16x128xf32>
    %11 = arith.truncf %10 : vector<16x128xf32> to vector<16x128xbf16>
    %c0_7 = arith.constant 0 : index
    %c0_8 = arith.constant 0 : index
    %12 = vector.load %arg6[%c0_7, %c0_8] : memref<128x128xbf16, #tpu.memory_space<vmem>>, vector<128x128xbf16>
    %cst_9 = arith.constant dense<0.000000e+00> : vector<16x128xf32>
    %13 = tpu.matmul %11, %12, %cst_9 {dimension_numbers = #tpu.dot_dimension_numbers<[1], [0], [0], [1], [0, 0, 1, 1], [], []>} : vector<16x128xbf16>, vector<128x128xbf16>, vector<16x128xf32> -> vector<16x128xf32>
    %c0_i32_10 = arith.constant 0 : i32
    %14 = arith.cmpi slt, %arg1, %c0_i32_10 : i32
    %15 = arith.extui %14 : i1 to i32
    %c0_i32_11 = arith.constant 0 : i32
    %16 = arith.cmpi ne, %15, %c0_i32_11 : i32
    scf.if %16 {
      %c0_14 = arith.constant 0 : index
      %c0_15 = arith.constant 0 : index
      %20 = vector.load %arg9[%c0_14, %c0_15] : memref<16x128xf32, #tpu.memory_space<vmem>>, vector<16x128xf32>
      %21 = arith.addf %20, %13 : vector<16x128xf32>
      %c0_16 = arith.constant 0 : index
      %c0_17 = arith.constant 0 : index
      %22 = vector.load %arg9[%c0_16, %c0_17] : memref<16x128xf32, #tpu.memory_space<vmem>>, vector<16x128xf32>
      tpu.vector_store %arg9[%c0_16, %c0_17], %21 {strides = array<i32>} : memref<16x128xf32, #tpu.memory_space<vmem>>, vector<16x128xf32>,
    } else {
    }
    %c0_i32_12 = arith.constant 0 : i32
    %17 = arith.cmpi eq, %arg1, %c0_i32_12 : i32
    %18 = arith.extui %17 : i1 to i32
    %c0_i32_13 = arith.constant 0 : i32
    %19 = arith.cmpi ne, %18, %c0_i32_13 : i32
    scf.if %19 {
      %c0_14 = arith.constant 0 : index
      %c0_15 = arith.constant 0 : index
      %20 = memref.load %arg2[%c0_14, %c0_15] : memref<1x1xf32, #tpu.memory_space<smem>>
      %c0_16 = arith.constant 0 : index
      %c0_17 = arith.constant 0 : index
      %21 = vector.load %arg9[%c0_16, %c0_17] : memref<16x128xf32, #tpu.memory_space<vmem>>, vector<16x128xf32>
      %22 = arith.addf %21, %13 : vector<16x128xf32>
      %c0_18 = arith.constant 0 : index
      %c0_19 = arith.constant 0 : index
      %23 = vector.load %arg7[%c0_18, %c0_19] : memref<1x128xf32, #tpu.memory_space<vmem>>, vector<1x128xf32>
      %24 = vector.broadcast %23 : vector<1x128xf32> to vector<16x128xf32>
      %25 = arith.addf %22, %24 : vector<16x128xf32>
      %c0_20 = arith.constant 0 : index
      %c0_21 = arith.constant 0 : index
      %26 = vector.load %arg3[%c0_20, %c0_21] : memref<16x128xf32, #tpu.memory_space<vmem>>, vector<16x128xf32>
      %27 = vector.broadcast %20 : f32 to vector<16x128xf32>
      %28 = arith.mulf %25, %27 : vector<16x128xf32>
      %29 = arith.addf %26, %28 : vector<16x128xf32>
      %c0_22 = arith.constant 0 : index
      %c0_23 = arith.constant 0 : index
      %30 = vector.load %arg8[%c0_22, %c0_23] : memref<16x128xf32, #tpu.memory_space<vmem>>, vector<16x128xf32>
      tpu.vector_store %arg8[%c0_22, %c0_23], %29 {strides = array<i32>} : memref<16x128xf32, #tpu.memory_space<vmem>>, vector<16x128xf32>,
    } else {
    }
    return
  }
  func.func @transform_0(%arg0: i32, %arg1: i32) -> (i32, i32) {
    %c0_i32 = arith.constant 0 : i32
    %c0_i32_0 = arith.constant 0 : i32
    %c0_i32_1 = arith.constant 0 : i32
    return %c0_i32, %c0_i32_0 : i32, i32
  }
  func.func @transform_1(%arg0: i32, %arg1: i32) -> (i32, i32) {
    %c0_i32 = arith.constant 0 : i32
    %c0_i32_0 = arith.constant 0 : i32
    return %arg0, %c0_i32 : i32, i32
  }
  func.func @transform_2(%arg0: i32, %arg1: i32) -> (i32, i32) {
    %c0_i32 = arith.constant 0 : i32
    %c0_i32_0 = arith.constant 0 : i32
    return %c0_i32, %arg1 : i32, i32
  }
  func.func @transform_3(%arg0: i32, %arg1: i32) -> (i32, i32) {
    %c0_i32 = arith.constant 0 : i32
    %c0_i32_0 = arith.constant 0 : i32
    return %c0_i32, %arg1 : i32, i32
  }
  func.func @transform_4(%arg0: i32, %arg1: i32) -> (i32, i32) {
    %c0_i32 = arith.constant 0 : i32
    %c0_i32_0 = arith.constant 0 : i32
    return %arg1, %c0_i32 : i32, i32
  }
  func.func @transform_5(%arg0: i32, %arg1: i32) -> (i32, i32) {
    %c0_i32 = arith.constant 0 : i32
    %c0_i32_0 = arith.constant 0 : i32
    %c0_i32_1 = arith.constant 0 : i32
    return %c0_i32, %c0_i32_0 : i32, i32
  }
  func.func @transform_6(%arg0: i32, %arg1: i32) -> (i32, i32) {
    %c0_i32 = arith.constant 0 : i32
    %c0_i32_0 = arith.constant 0 : i32
    return %arg0, %c0_i32 : i32, i32
  }
}

</mosaic_0001>

<llo_original>
// kernel: tpu_custom_call.1
$region0: #{tpu_custom_call.1}
  #allocation0 [shape = 'u32[]', space=smem, size = 0x4, offset = 0x4, fixed_abs, tag = 'smem constant byte address 0x4 - core index']
  #allocation1 [shape = 'u32[144,128]{1,0:T(1,128)}', space=vmem, size = 0x12000, scoped, tag = 'internal scratch']
  #allocation2 [shape = 'f32[16,128]{1,0:T(8,128)}', space=vmem, size = 0x2000, scoped, tag = 'scratch operand']
  #allocation3 [shape = 'bf16[16,128]{1,0:T(16,128)(2,1)}', space=vmem, size = 0x1000, scoped, tag = 'scratch operand']
  #allocation4 [shape = 'f32[1,1]{1,0:T(1,128)S(6)}', space=smem, size = 0x200, scoped, tag = 'scoped memory for tpu_custom_call.1']
  %s0 = inlined_call_operand.<no memory space> [shape: f32[1,1], index: 0, kind: input, shape index: {}]
  %s1 = inlined_call_operand.hbm [shape: f32[16,128], index: 1, kind: input, shape index: {}]
  %s2 = inlined_call_operand.hbm [shape: bf16[128,128], index: 2, kind: input, shape index: {}]
  %s3 = inlined_call_operand.hbm [shape: f32[1,128], index: 3, kind: input, shape index: {}]
  %s4 = inlined_call_operand.hbm [shape: bf16[128,128], index: 4, kind: input, shape index: {}]
  %s5 = inlined_call_operand.hbm [shape: f32[1,128], index: 5, kind: input, shape index: {}]
  %s6 = inlined_call_operand.hbm [shape: f32[16,128], index: 6, kind: output, shape index: {}]
  %s7 = sld [smem:[#allocation0]]
  $region66: #{tpu_custom_call.1} parent=0
    _
  %s9 = ssub.s32 1, %s7
  %s10 = scalar_select 0, %s9, %s7
  %11 = sst [smem:[#allocation4]] %s0
  $region1: #{tpu_custom_call.1} parent=0
    #allocation5 [shape = 'u8[8192]{0}', space=vmem, size = 0x2000, scoped, tag = 'input window, operand 1, single buffered']
    #allocation6 [shape = 's32[1]{0}', space=sflag, size = 0x4, scoped, tag = 'scoped memory for tpu_custom_call.1']
    #allocation7 [shape = 's32[1]{0}', space=sflag, size = 0x4, scoped, tag = 'scoped memory for tpu_custom_call.1']
    #allocation8 [shape = 'u8[32768]{0}', space=vmem, size = 0x8000, scoped, tag = 'input window, operand 2, single buffered']
    #allocation9 [shape = 's32[1]{0}', space=sflag, size = 0x4, scoped, tag = 'scoped memory for tpu_custom_call.1']
    #allocation10 [shape = 'u8[512]{0}', space=vmem, size = 0x400, scoped, tag = 'input window, operand 3, single buffered']
    #allocation11 [shape = 'u8[32768]{0}', space=vmem, size = 0x8000, scoped, tag = 'input window, operand 4, single buffered']
    #allocation12 [shape = 's32[1]{0}', space=sflag, size = 0x4, scoped, tag = 'scoped memory for tpu_custom_call.1']
    #allocation13 [shape = 'u8[512]{0}', space=vmem, size = 0x400, scoped, tag = 'input window, operand 5, single buffered']
    #allocation14 [shape = 'u8[8192]{0}', space=vmem, size = 0x2000, scoped, tag = 'output window, operand 0, single buffered']
    %12 = vsyncpa [#allocation6], 0
    %13 = vsyncpa [#allocation9], 0
    %14 = vsyncpa [#allocation12], 0
    %15 = vsyncpa [#allocation7], 0
    // Predicated region
    $region2: #{tpu_custom_call.1} parent=1 // pred_check
      _
    $region3: #{tpu_custom_call.1} parent=1 // pred_check_branch
      %17 = sbr.rel (0) target = $region5
    $region4: #{tpu_custom_call.1} parent=1 // pred_region
      _
    $region5: #{tpu_custom_call.1} parent=1 // pred_fallthru
      _
    // Predicated region
    $region6: #{tpu_custom_call.1} parent=1 // pred_check
      _
    $region7: #{tpu_custom_call.1} parent=1 // pred_check_branch
      %19 = sbr.rel (0) target = $region9
    $region8: #{tpu_custom_call.1} parent=1 // pred_region
      %s21 = ssub.s32 256, 256
      %22 = vsyncadd [#allocation6], %s21
      %s23 = sshll.u32 [#allocation5], 4
      %s24 = int_to_ptr.vmem [resolvable:$true] %s23
      %29 = dma.hbm_to_vmem [thread:$0]  %s1, 256, %s24, [#allocation6], 128, 128, 8
    $region9: #{tpu_custom_call.1} parent=1 // pred_fallthru
      _
    // Predicated region
    $region10: #{tpu_custom_call.1} parent=1 // pred_check
      _
    $region11: #{tpu_custom_call.1} parent=1 // pred_check_branch
      %31 = sbr.rel (0) target = $region13
    $region12: #{tpu_custom_call.1} parent=1 // pred_region
      %s33 = ssub.s32 1024, 1024
      %34 = vsyncadd [#allocation9], %s33
      %s35 = sshll.u32 [#allocation8], 4
      %s36 = int_to_ptr.vmem [resolvable:$true] %s35
      %41 = dma.hbm_to_vmem [thread:$0]  %s2, 1024, %s36, [#allocation9], 64, 64, 4
    $region13: #{tpu_custom_call.1} parent=1 // pred_fallthru
      _
    // Predicated region
    $region14: #{tpu_custom_call.1} parent=1 // pred_check
      _
    $region15: #{tpu_custom_call.1} parent=1 // pred_check_branch
      %43 = sbr.rel (0) target = $region17
    $region16: #{tpu_custom_call.1} parent=1 // pred_region
      %s45 = ssub.s32 16, 16
      %46 = vsyncadd [#allocation9], %s45
      %s48 = sshll.u32 [#allocation10], 4
      %s49 = int_to_ptr.vmem [resolvable:$true] %s48
      %51 = dma.hbm_to_vmem [thread:$0]  %s3, 16, %s49, [#allocation9]
    $region17: #{tpu_custom_call.1} parent=1 // pred_fallthru
      _
    // Predicated region
    $region18: #{tpu_custom_call.1} parent=1 // pred_check
      _
    $region19: #{tpu_custom_call.1} parent=1 // pred_check_branch
      %53 = sbr.rel (0) target = $region21
    $region20: #{tpu_custom_call.1} parent=1 // pred_region
      %s55 = ssub.s32 1024, 1024
      %56 = vsyncadd [#allocation12], %s55
      %s57 = sshll.u32 [#allocation11], 4
      %s58 = int_to_ptr.vmem [resolvable:$true] %s57
      %63 = dma.hbm_to_vmem [thread:$0]  %s4, 1024, %s58, [#allocation12], 64, 64, 4
    $region21: #{tpu_custom_call.1} parent=1 // pred_fallthru
      _
    // Predicated region
    $region22: #{tpu_custom_call.1} parent=1 // pred_check
      _
    $region23: #{tpu_custom_call.1} parent=1 // pred_check_branch
      %65 = sbr.rel (0) target = $region25
    $region24: #{tpu_custom_call.1} parent=1 // pred_region
      %s67 = ssub.s32 16, 16
      %68 = vsyncadd [#allocation12], %s67
      %s70 = sshll.u32 [#allocation13], 4
      %s71 = int_to_ptr.vmem [resolvable:$true] %s70
      %73 = dma.hbm_to_vmem [thread:$0]  %s5, 16, %s71, [#allocation12]
    $region25: #{tpu_custom_call.1} parent=1 // pred_fallthru
      _
    // Predicated region
    $region26: #{tpu_custom_call.1} parent=1 // pred_check
      _
    $region27: #{tpu_custom_call.1} parent=1 // pred_check_branch
      %75 = sbr.rel (0) target = $region29
    $region28: #{tpu_custom_call.1} parent=1 // pred_region
      %76 = dma.done [#allocation6], 256
    $region29: #{tpu_custom_call.1} parent=1 // pred_fallthru
      _
    // Predicated region
    $region30: #{tpu_custom_call.1} parent=1 // pred_check
      _
    $region31: #{tpu_custom_call.1} parent=1 // pred_check_branch
      %78 = sbr.rel (0) target = $region33
    $region32: #{tpu_custom_call.1} parent=1 // pred_region
      %79 = dma.done [#allocation9], 1024
    $region33: #{tpu_custom_call.1} parent=1 // pred_fallthru
      _
    // Predicated region
    $region34: #{tpu_custom_call.1} parent=1 // pred_check
      _
    $region35: #{tpu_custom_call.1} parent=1 // pred_check_branch
      %81 = sbr.rel (0) target = $region37
    $region36: #{tpu_custom_call.1} parent=1 // pred_region
      %82 = dma.done [#allocation9], 16
    $region37: #{tpu_custom_call.1} parent=1 // pred_fallthru
      _
    // Predicated region
    $region38: #{tpu_custom_call.1} parent=1 // pred_check
      _
    $region39: #{tpu_custom_call.1} parent=1 // pred_check_branch
      %84 = sbr.rel (0) target = $region41
    $region40: #{tpu_custom_call.1} parent=1 // pred_region
      %85 = dma.done [#allocation12], 1024
    $region41: #{tpu_custom_call.1} parent=1 // pred_fallthru
      _
    // Predicated region
    $region42: #{tpu_custom_call.1} parent=1 // pred_check
      _
    $region43: #{tpu_custom_call.1} parent=1 // pred_check_branch
      %87 = sbr.rel (0) target = $region45
    $region44: #{tpu_custom_call.1} parent=1 // pred_region
      %88 = dma.done [#allocation12], 16
    $region45: #{tpu_custom_call.1} parent=1 // pred_fallthru
      _
    %p90 = scmp.eq.s32.totalorder 0, 0
    // Predicated region
    $region46: #{tpu_custom_call.1} parent=1 // pred_check
      %p91 = pneg %p90
    $region47: #{tpu_custom_call.1} parent=1 // pred_check_branch
      %93 = sbr.rel (%p91) target = $region49
    $region48: #{tpu_custom_call.1} parent=1 // pred_region
      %94 = vst [vmem:[#allocation2] sm:$0xff] 0.0
      %95 = vst [vmem:[#allocation2 + $0x8] sm:$0xff] 0.0
      %v96 = vld [vmem:[#allocation5] sm:$0xff]
      %v97 = vld [vmem:[#allocation5 + $0x8] sm:$0xff]
      %v98 = vpack.c.bf16 %v97, %v96
      %99 = vst [vmem:[#allocation3] sm:$0xff] %v98
    $region49: #{tpu_custom_call.1} parent=1 // pred_fallthru
      _
    %v100 = vld [vmem:[#allocation3] sm:$0xff]
    %v101 = vld [vmem:[#allocation8] sm:$0xf]
    %v102 = vld [vmem:[#allocation8 + $0x4] sm:$0xf]
    %v103 = vld [vmem:[#allocation8 + $0x8] sm:$0xf]
    %v104 = vld [vmem:[#allocation8 + $0xc] sm:$0xf]
    %v105 = vld [vmem:[#allocation8 + $0x10] sm:$0xf]
    %v106 = vld [vmem:[#allocation8 + $0x14] sm:$0xf]
    %v107 = vld [vmem:[#allocation8 + $0x18] sm:$0xf]
    %v108 = vld [vmem:[#allocation8 + $0x1c] sm:$0xf]
    %v109 = vld [vmem:[#allocation8 + $0x20] sm:$0xf]
    %v110 = vld [vmem:[#allocation8 + $0x24] sm:$0xf]
    %v111 = vld [vmem:[#allocation8 + $0x28] sm:$0xf]
    %v112 = vld [vmem:[#allocation8 + $0x2c] sm:$0xf]
    %v113 = vld [vmem:[#allocation8 + $0x30] sm:$0xf]
    %v114 = vld [vmem:[#allocation8 + $0x34] sm:$0xf]
    %v115 = vld [vmem:[#allocation8 + $0x38] sm:$0xf]
    %v116 = vld [vmem:[#allocation8 + $0x3c] sm:$0xf]
    %v117 = vld [vmem:[#allocation10] sm:$0x1]
    %v119 = vlaneseq
    %v120 = vshrl.u32 %v119, 7
    %v121 = vsub.s32 0, %v120
    %v122 = vrot.slane %v117, %v121
    %v140 = vunpack.c.l.b16 %v101
    %v141 = vunpack.c.l.b16 %v102
    %v142 = vunpack.c.l.b16 %v103
    %v143 = vunpack.c.l.b16 %v104
    %v144 = vunpack.c.l.b16 %v105
    %v145 = vunpack.c.l.b16 %v106
    %v146 = vunpack.c.l.b16 %v107
    %v147 = vunpack.c.l.b16 %v108
    %v148 = vunpack.c.l.b16 %v109
    %v149 = vunpack.c.l.b16 %v110
    %v150 = vunpack.c.l.b16 %v111
    %v151 = vunpack.c.l.b16 %v112
    %v152 = vunpack.c.l.b16 %v113
    %v153 = vunpack.c.l.b16 %v114
    %v154 = vunpack.c.l.b16 %v115
    %v155 = vunpack.c.l.b16 %v116
    %v156 = vpack.c.b16 %v141, %v140
    %v157 = vpack.c.b16 %v143, %v142
    %v158 = vpack.c.b16 %v145, %v144
    %v159 = vpack.c.b16 %v147, %v146
    %v160 = vpack.c.b16 %v149, %v148
    %v161 = vpack.c.b16 %v151, %v150
    %v162 = vpack.c.b16 %v153, %v152
    %v163 = vpack.c.b16 %v155, %v154
    %172 = vmatprep.subr.bf16.mxu0 0
    %173 = vmatpush1.bf16.msra.mxu0 %v156
    %174 = vmatprep.subr.bf16.mxu0 0
    %175 = vmatpush1.bf16.msra.mxu0 %v157
    %176 = vmatprep.subr.bf16.mxu0 0
    %177 = vmatpush1.bf16.msra.mxu0 %v158
    %178 = vmatprep.subr.bf16.mxu0 0
    %179 = vmatpush1.bf16.msra.mxu0 %v159
    %180 = vmatprep.subr.bf16.mxu0 0
    %181 = vmatpush1.bf16.msra.mxu0 %v160
    %182 = vmatprep.subr.bf16.mxu0 0
    %183 = vmatpush1.bf16.msra.mxu0 %v161
    %184 = vmatprep.subr.bf16.mxu0 0
    %185 = vmatpush1.bf16.msra.mxu0 %v162
    %186 = vmatprep.subr.bf16.mxu0 0
    %187 = vmatpush1.bf16.msra.mxu0 %v163
    %188 = vmatprep.subr.bf16.mxu0 0
    %189 = vmatpush1.bf16.msra.mxu0 0
    %190 = vmatprep.subr.bf16.mxu0 0
    %191 = vmatpush1.bf16.msra.mxu0 0
    %192 = vmatprep.subr.bf16.mxu0 0
    %193 = vmatpush1.bf16.msra.mxu0 0
    %194 = vmatprep.subr.bf16.mxu0 0
    %195 = vmatpush1.bf16.msra.mxu0 0
    %196 = vmatprep.subr.bf16.mxu0 0
    %197 = vmatpush1.bf16.msra.mxu0 0
    %198 = vmatprep.subr.bf16.mxu0 0
    %199 = vmatpush1.bf16.msra.mxu0 0
    %200 = vmatprep.subr.bf16.mxu0 0
    %201 = vmatpush1.bf16.msra.mxu0 0
    %202 = vmatprep.subr.bf16.mxu0 0
    %203 = vmatpush1.bf16.msra.mxu0 0
    %204 = vmatprep.mubr.bf16.mxu0 0
    %205 = vmatmul.mubr.bf16.gmra.mrb[0].mxu0 %v100
    %v206 = vpop.f32.mrb[0].mxu0
    %v207 = vadd.f32 %v122, %v206
    %v208 = vpop.f32.mrb[0].mxu0
    %v209 = vpop.f32.mrb[0].mxu0
    %v210 = vadd.f32 %v122, %v209
    %v211 = vpop.f32.mrb[0].mxu0
    %212 = vdwg.mxu0
    %v213 = vmax.f32 %v207, 0.0
    %v214 = vmax.f32 %v210, 0.0
    %v215 = vpack.c.bf16 %v214, %v213
    %v216 = vld [vmem:[#allocation11] sm:$0xf]
    %v217 = vld [vmem:[#allocation11 + $0x4] sm:$0xf]
    %v218 = vld [vmem:[#allocation11 + $0x8] sm:$0xf]
    %v219 = vld [vmem:[#allocation11 + $0xc] sm:$0xf]
    %v220 = vld [vmem:[#allocation11 + $0x10] sm:$0xf]
    %v221 = vld [vmem:[#allocation11 + $0x14] sm:$0xf]
    %v222 = vld [vmem:[#allocation11 + $0x18] sm:$0xf]
    %v223 = vld [vmem:[#allocation11 + $0x1c] sm:$0xf]
    %v224 = vld [vmem:[#allocation11 + $0x20] sm:$0xf]
    %v225 = vld [vmem:[#allocation11 + $0x24] sm:$0xf]
    %v226 = vld [vmem:[#allocation11 + $0x28] sm:$0xf]
    %v227 = vld [vmem:[#allocation11 + $0x2c] sm:$0xf]
    %v228 = vld [vmem:[#allocation11 + $0x30] sm:$0xf]
    %v229 = vld [vmem:[#allocation11 + $0x34] sm:$0xf]
    %v230 = vld [vmem:[#allocation11 + $0x38] sm:$0xf]
    %v231 = vld [vmem:[#allocation11 + $0x3c] sm:$0xf]
    %v248 = vunpack.c.l.b16 %v216
    %v249 = vunpack.c.l.b16 %v217
    %v250 = vunpack.c.l.b16 %v218
    %v251 = vunpack.c.l.b16 %v219
    %v252 = vunpack.c.l.b16 %v220
    %v253 = vunpack.c.l.b16 %v221
    %v254 = vunpack.c.l.b16 %v222
    %v255 = vunpack.c.l.b16 %v223
    %v256 = vunpack.c.l.b16 %v224
    %v257 = vunpack.c.l.b16 %v225
    %v258 = vunpack.c.l.b16 %v226
    %v259 = vunpack.c.l.b16 %v227
    %v260 = vunpack.c.l.b16 %v228
    %v261 = vunpack.c.l.b16 %v229
    %v262 = vunpack.c.l.b16 %v230
    %v263 = vunpack.c.l.b16 %v231
    %v264 = vpack.c.b16 %v249, %v248
    %v265 = vpack.c.b16 %v251, %v250
    %v266 = vpack.c.b16 %v253, %v252
    %v267 = vpack.c.b16 %v255, %v254
    %v268 = vpack.c.b16 %v257, %v256
    %v269 = vpack.c.b16 %v259, %v258
    %v270 = vpack.c.b16 %v261, %v260
    %v271 = vpack.c.b16 %v263, %v262
    %280 = vmatprep.subr.bf16.mxu0 0
    %281 = vmatpush1.bf16.msra.mxu0 %v264
    %282 = vmatprep.subr.bf16.mxu0 0
    %283 = vmatpush1.bf16.msra.mxu0 %v265
    %284 = vmatprep.subr.bf16.mxu0 0
    %285 = vmatpush1.bf16.msra.mxu0 %v266
    %286 = vmatprep.subr.bf16.mxu0 0
    %287 = vmatpush1.bf16.msra.mxu0 %v267
    %288 = vmatprep.subr.bf16.mxu0 0
    %289 = vmatpush1.bf16.msra.mxu0 %v268
    %290 = vmatprep.subr.bf16.mxu0 0
    %291 = vmatpush1.bf16.msra.mxu0 %v269
    %292 = vmatprep.subr.bf16.mxu0 0
    %293 = vmatpush1.bf16.msra.mxu0 %v270
    %294 = vmatprep.subr.bf16.mxu0 0
    %295 = vmatpush1.bf16.msra.mxu0 %v271
    %296 = vmatprep.subr.bf16.mxu0 0
    %297 = vmatpush1.bf16.msra.mxu0 0
    %298 = vmatprep.subr.bf16.mxu0 0
    %299 = vmatpush1.bf16.msra.mxu0 0
    %300 = vmatprep.subr.bf16.mxu0 0
    %301 = vmatpush1.bf16.msra.mxu0 0
    %302 = vmatprep.subr.bf16.mxu0 0
    %303 = vmatpush1.bf16.msra.mxu0 0
    %304 = vmatprep.subr.bf16.mxu0 0
    %305 = vmatpush1.bf16.msra.mxu0 0
    %306 = vmatprep.subr.bf16.mxu0 0
    %307 = vmatpush1.bf16.msra.mxu0 0
    %308 = vmatprep.subr.bf16.mxu0 0
    %309 = vmatpush1.bf16.msra.mxu0 0
    %310 = vmatprep.subr.bf16.mxu0 0
    %311 = vmatpush1.bf16.msra.mxu0 0
    %312 = vmatprep.mubr.bf16.mxu0 0
    %313 = vmatmul.mubr.bf16.gmra.mrb[0].mxu0 %v215
    %v314 = vpop.f32.mrb[0].mxu0
    %v315 = vadd.f32 0.0, %v314
    %v316 = vpop.f32.mrb[0].mxu0
    %v317 = vpop.f32.mrb[0].mxu0
    %v318 = vadd.f32 0.0, %v317
    %v319 = vpop.f32.mrb[0].mxu0
    %320 = vdwg.mxu0
    %p321 = scmp.lt.s32.totalorder 0, 0
    // Predicated region
    $region50: #{tpu_custom_call.1} parent=1 // pred_check
      %p322 = pneg %p321
    $region51: #{tpu_custom_call.1} parent=1 // pred_check_branch
      %324 = sbr.rel (%p322) target = $region53
    $region52: #{tpu_custom_call.1} parent=1 // pred_region
      %v325 = vld [vmem:[#allocation2] sm:$0xff]
      %v326 = vld [vmem:[#allocation2 + $0x8] sm:$0xff]
      %v327 = vadd.f32 %v325, %v315
      %v328 = vadd.f32 %v326, %v318
      %329 = vst [vmem:[#allocation2] sm:$0xff] %v327
      %330 = vst [vmem:[#allocation2 + $0x8] sm:$0xff] %v328
    $region53: #{tpu_custom_call.1} parent=1 // pred_fallthru
      _
    // Predicated region
    $region54: #{tpu_custom_call.1} parent=1 // pred_check
      %p331 = pneg %p90
    $region55: #{tpu_custom_call.1} parent=1 // pred_check_branch
      %333 = sbr.rel (%p331) target = $region57
    $region56: #{tpu_custom_call.1} parent=1 // pred_region
      %s334 = sld [smem:[#allocation4]]
      %v335 = vld [vmem:[#allocation2] sm:$0xff]
      %v336 = vld [vmem:[#allocation2 + $0x8] sm:$0xff]
      %v337 = vadd.f32 %v335, %v315
      %v338 = vadd.f32 %v336, %v318
      %v339 = vld [vmem:[#allocation13] sm:$0x1]
      %v341 = vlaneseq
      %v342 = vshrl.u32 %v341, 7
      %v343 = vsub.s32 0, %v342
      %v344 = vrot.slane %v339, %v343
      %v346 = vadd.f32 %v337, %v344
      %v347 = vadd.f32 %v338, %v344
      %v348 = vld [vmem:[#allocation5] sm:$0xff]
      %v349 = vld [vmem:[#allocation5 + $0x8] sm:$0xff]
      %v350 = vstv %s334
      %v351 = vmul.f32 %v346, %v350
      %v352 = vmul.f32 %v347, %v350
      %v353 = vadd.f32 %v348, %v351
      %v354 = vadd.f32 %v349, %v352
      %355 = vst [vmem:[#allocation14] sm:$0xff] %v353
      %356 = vst [vmem:[#allocation14 + $0x8] sm:$0xff] %v354
    $region57: #{tpu_custom_call.1} parent=1 // pred_fallthru
      _
    // Predicated region
    $region58: #{tpu_custom_call.1} parent=1 // pred_check
      _
    $region59: #{tpu_custom_call.1} parent=1 // pred_check_branch
      %358 = sbr.rel (0) target = $region61
    $region60: #{tpu_custom_call.1} parent=1 // pred_region
      %s360 = ssub.s32 256, 256
      %361 = vsyncadd [#allocation7], %s360
      %s362 = sshll.u32 [#allocation14], 4
      %s363 = int_to_ptr.vmem [resolvable:$true] %s362
      %368 = dma.vmem_to_hbm [thread:$0]  %s363, 256, %s6, [#allocation7], 128, 128, 8
    $region61: #{tpu_custom_call.1} parent=1 // pred_fallthru
      _
    // Predicated region
    $region62: #{tpu_custom_call.1} parent=1 // pred_check
      _
    $region63: #{tpu_custom_call.1} parent=1 // pred_check_branch
      %370 = sbr.rel (0) target = $region65
    $region64: #{tpu_custom_call.1} parent=1 // pred_region
      %371 = dma.done [#allocation7], 256
    $region65: #{tpu_custom_call.1} parent=1 // pred_fallthru
      _
    %372 = vsyncpa [#allocation6], 1
    %373 = vsyncpa [#allocation9], 1
    %374 = vsyncpa [#allocation12], 1
    %375 = vsyncpa [#allocation7], 1

</llo_original>
